<compile_context>
chip_gen: v7x
topology: tpu7x:2x2x1
jax: 0.10.0
libtpu: 0.0.40
codegen_flags: <defaults>
</compile_context>

<pallas_src>
import functools

import jax
import jax.numpy as jnp
from jax import lax
from jax.experimental import pallas as pl
from jax.experimental.pallas import tpu as pltpu


def _round_up(a, b):
    return (a + b - 1) // b * b


# ----------------------------- Pallas kernel --------------------------------
def _sn_conv_act_kernel(x_ref, w_ref, b_ref, o_ref, *, kh, kw, row_stride,
                        negative_slope):
    """One batch image per grid step.

    x_ref : (1, C_in_p, Lp)        bf16  flattened zero-padded image (+ tail pad)
    w_ref : (kh*kw, C_out, C_in_p) bf16  w_ref[i*kw + j] == W_sn[:, :, i, j]
    b_ref : (C_out, 1)             f32
    o_ref : (1, C_out, M)          f32   M = multiple of 128 (lane-dense output)
    """
    c_out = o_ref.shape[1]
    m = o_ref.shape[2]

    acc = jnp.zeros((c_out, m), dtype=jnp.float32)
    # Unrolled static loop over the kh*kw taps: each tap is a shifted view of
    # the flattened image (shift = i*row_stride + j) and a small MXU matmul
    # contracting over the (padded) input channels.
    for i in range(kh):
        for j in range(kw):
            shift = i * row_stride + j
            x_shift = x_ref[0, :, pl.ds(shift, m)]          # (C_in_p, M) bf16
            w_ij = w_ref[i * kw + j]                        # (C_out, C_in_p) bf16
            acc = acc + jnp.dot(w_ij, x_shift,
                                preferred_element_type=jnp.float32)

    y = acc + b_ref[...]                                    # f32 epilogue
    o_ref[0] = jnp.where(y >= 0.0, y, negative_slope * y).astype(o_ref.dtype)


def _pallas_conv_lrelu(x_flat, w_k, bias2, *, kh, kw, row_stride, m_out,
                       negative_slope):
    n, c_in_p, lp = x_flat.shape
    kk, c_out, _ = w_k.shape
    kernel = functools.partial(_sn_conv_act_kernel, kh=kh, kw=kw,
                               row_stride=row_stride,
                               negative_slope=negative_slope)
    return pl.pallas_call(
        kernel,
        out_shape=jax.ShapeDtypeStruct((n, c_out, m_out), jnp.float32),
        grid_spec=pltpu.PrefetchScalarGridSpec(
            num_scalar_prefetch=0,
            grid=(n,),
            in_specs=[
                # Per-image flattened input (blocks span full C_in_p / Lp dims).
                pl.BlockSpec((1, c_in_p, lp), lambda b: (b, 0, 0)),
                # Weight / bias: constant index maps -> DMA'd once, kept resident.
                pl.BlockSpec((kk, c_out, c_in_p), lambda b: (0, 0, 0)),
                pl.BlockSpec((c_out, 1), lambda b: (0, 0)),
            ],
            out_specs=pl.BlockSpec((1, c_out, m_out), lambda b: (b, 0, 0)),
        ),
        compiler_params=pltpu.CompilerParams(
            dimension_semantics=("parallel",)),
    )(x_flat, w_k, bias2)


# ------------------------------ JAX glue -------------------------------------
def _l2_normalize(v, eps=1e-12):
    return v / jnp.maximum(jnp.linalg.norm(v), eps)


def spectral_normalize(weight, u, n_power_iterations=1, eps=1e-12):
    """One-step power-iteration spectral norm (PyTorch training-mode semantics)."""
    c_out = weight.shape[0]
    w_mat = weight.reshape(c_out, -1)
    v = None
    for _ in range(n_power_iterations):
        v = _l2_normalize(w_mat.T @ u, eps)
        u = _l2_normalize(w_mat @ v, eps)
    sigma = u @ (w_mat @ v)
    # NOTE: updated `u` is returned but not persisted (stateless forward).
    return weight / sigma, u


def sn_conv_with_activation(x, weight, bias, u, *, stride=1, padding=0,
                            negative_slope=0.2):
    """Forward of SN_ConvWithActivation.  x: (N, C_in, H, W) NCHW, returns NCHW."""
    # TODO(synk): dilation > 1 and groups > 1 (module defaults are 1) not implemented.
    n, c_in, h, w = x.shape
    c_out, c_in_w, kh, kw = weight.shape
    assert c_in_w == c_in, "groups != 1 not supported"

    # Spectral norm (f32, parameter-side glue).
    w_sn, _ = spectral_normalize(weight, u)

    h_pad, w_pad = h + 2 * padding, w + 2 * padding
    h_dense, w_dense = h_pad - kh + 1, w_pad - kw + 1        # stride-1 dense output
    assert h_dense > 0 and w_dense > 0

    m_dense = h_dense * w_pad                                 # wide (per-row padded) count
    m_out = _round_up(m_dense, 128)                           # lane-dense, unmasked stores
    max_shift = (kh - 1) * w_pad + (kw - 1)
    lp = _round_up(m_out + max_shift, 128)                    # flat length incl. tail pad

    c_in_p = _round_up(c_in, 8)                               # pad channels to sublane multiple

    # Pad spatially (+ channel pad), flatten spatial, tail-pad, cast to bf16.
    x_p = jnp.pad(x, ((0, 0), (0, c_in_p - c_in),
                      (padding, padding), (padding, padding)))
    x_flat = x_p.reshape(n, c_in_p, h_pad * w_pad)
    x_flat = jnp.pad(x_flat, ((0, 0), (0, 0), (0, lp - h_pad * w_pad)))
    x_flat = x_flat.astype(jnp.bfloat16)

    # Weight taps laid out as (kh*kw, C_out, C_in_p), bf16.
    w_k = jnp.pad(w_sn, ((0, 0), (0, c_in_p - c_in), (0, 0), (0, 0)))
    w_k = w_k.transpose(2, 3, 0, 1).reshape(kh * kw, c_out, c_in_p)
    w_k = w_k.astype(jnp.bfloat16)

    b2 = bias.reshape(c_out, 1).astype(jnp.float32)

    out_wide = _pallas_conv_lrelu(x_flat, w_k, b2, kh=kh, kw=kw,
                                  row_stride=w_pad, m_out=m_out,
                                  negative_slope=negative_slope)

    # (N, C_out, M) -> NCHW directly: reshape + drop the garbage columns.
    dense = out_wide[:, :, :m_dense].reshape(n, c_out, h_dense, w_pad)
    dense = dense[:, :, :, :w_dense]
    # TODO(synk): stride > 1 handled by dense compute + subsample (correct, not optimal).
    return dense[:, :, ::stride, ::stride]


# ------------------------------ reference ------------------------------------
def _reference(x, weight, bias, u, *, stride=1, padding=0, negative_slope=0.2):
    """Same math with the same bf16-rounded matmul operands, via lax.conv."""
    w_sn, _ = spectral_normalize(weight, u)
    xb = x.astype(jnp.bfloat16).astype(jnp.float32)
    wb = w_sn.astype(jnp.bfloat16).astype(jnp.float32)
    y = lax.conv_general_dilated(
        xb, wb, window_strides=(stride, stride),
        padding=((padding, padding), (padding, padding)),
        dimension_numbers=("NCHW", "OIHW", "NCHW"),
        precision=lax.Precision.HIGHEST)
    y = y + bias.reshape(1, -1, 1, 1)
    return jnp.where(y >= 0, y, negative_slope * y)


# --------------------------------- main ---------------------------------------
if __name__ == "__main__":
    key = jax.random.PRNGKey(0)
    k_x, k_w, k_b, k_u = jax.random.split(key, 4)

    # Small shapes consistent with the module: Conv2d(4 -> 8, k=3, stride=1, pad=1)
    N, C_in, H, W = 2, 4, 16, 16
    C_out, kh, kw = 8, 3, 3
    stride, padding = 1, 1

    x = jax.random.normal(k_x, (N, C_in, H, W), dtype=jnp.float32)

    # kaiming_normal_ init (fan_in mode, gain sqrt(2)) as in the module __init__.
    fan_in = C_in * kh * kw
    std = (2.0 / fan_in) ** 0.5
    weight = std * jax.random.normal(k_w, (C_out, C_in, kh, kw), dtype=jnp.float32)
    # nn.Conv2d default bias init: U(-1/sqrt(fan_in), 1/sqrt(fan_in)).
    bound = 1.0 / (fan_in ** 0.5)
    bias = jax.random.uniform(k_b, (C_out,), minval=-bound, maxval=bound,
                              dtype=jnp.float32)
    # spectral_norm's left singular vector estimate u (random-normal, normalized).
    u = _l2_normalize(jax.random.normal(k_u, (C_out,), dtype=jnp.float32))

    out = sn_conv_with_activation(x, weight, bias, u,
                                  stride=stride, padding=padding)
    out = jax.block_until_ready(out)

    ref = _reference(x, weight, bias, u, stride=stride, padding=padding)
    H_out = (H + 2 * padding - kh) // stride + 1
    W_out = (W + 2 * padding - kw) // stride + 1
    assert out.shape == (N, C_out, H_out, W_out)
    max_diff = float(jnp.max(jnp.abs(out - ref)))
    assert jnp.allclose(out, ref, atol=1e-3, rtol=1e-3), (
        "mismatch vs reference, max abs diff = %g" % max_diff)

    print("KERNEL_OK")
</pallas_src>

<mosaic_0001>
module attributes {stable_mosaic.version = 11 : i64} {
  func.func @_sn_conv_act_kernel(%arg0: i32, %arg1: memref<1x8x512xbf16, #tpu.memory_space<vmem>>, %arg2: memref<9x8x8xbf16, #tpu.memory_space<vmem>>, %arg3: memref<8x1xf32, #tpu.memory_space<vmem>>, %arg4: memref<1x8x384xf32, #tpu.memory_space<vmem>>) attributes {dimension_semantics = [#tpu.dimension_semantics<parallel>], iteration_bounds = array<i64: 2>, scalar_prefetch = 0 : i64, scratch_operands = 0 : i64, tpu.core_type = #tpu.core_type<tc>, window_params = [{transform_indices = @transform_0, window_bounds = array<i64: 1, 8, 512>}, {pipeline_mode = #tpu.pipeline_mode<synchronous>, transform_indices = @transform_1, window_bounds = array<i64: 9, 8, 8>}, {pipeline_mode = #tpu.pipeline_mode<synchronous>, transform_indices = @transform_2, window_bounds = array<i64: 8, 1>}, {transform_indices = @transform_3, window_bounds = array<i64: 1, 8, 384>}]} {
    %cst = arith.constant 0.000000e+00 : f32
    %0 = vector.broadcast %cst : f32 to vector<8x384xf32>
    %c0 = arith.constant 0 : index
    %c0_0 = arith.constant 0 : index
    %c0_1 = arith.constant 0 : index
    %1 = vector.load %arg1[%c0, %c0_0, %c0_1] : memref<1x8x512xbf16, #tpu.memory_space<vmem>>, vector<1x8x384xbf16>
    %2 = vector.shape_cast %1 : vector<1x8x384xbf16> to vector<8x384xbf16>
    %c0_2 = arith.constant 0 : index
    %c0_3 = arith.constant 0 : index
    %c0_4 = arith.constant 0 : index
    %3 = vector.load %arg2[%c0_2, %c0_3, %c0_4] : memref<9x8x8xbf16, #tpu.memory_space<vmem>>, vector<1x8x8xbf16>
    %4 = vector.shape_cast %3 : vector<1x8x8xbf16> to vector<8x8xbf16>
    %cst_5 = arith.constant dense<0.000000e+00> : vector<8x384xf32>
    %5 = tpu.matmul %4, %2, %cst_5 {dimension_numbers = #tpu.dot_dimension_numbers<[1], [0], [0], [1], [0, 0, 1, 1], [], []>} : vector<8x8xbf16>, vector<8x384xbf16>, vector<8x384xf32> -> vector<8x384xf32>
    %6 = arith.addf %0, %5 : vector<8x384xf32>
    %c0_6 = arith.constant 0 : index
    %c0_7 = arith.constant 0 : index
    %c1 = arith.constant 1 : index
    %7 = vector.load %arg1[%c0_6, %c0_7, %c1] : memref<1x8x512xbf16, #tpu.memory_space<vmem>>, vector<1x8x384xbf16>
    %8 = vector.shape_cast %7 : vector<1x8x384xbf16> to vector<8x384xbf16>
    %c1_8 = arith.constant 1 : index
    %c0_9 = arith.constant 0 : index
    %c0_10 = arith.constant 0 : index
    %9 = vector.load %arg2[%c1_8, %c0_9, %c0_10] : memref<9x8x8xbf16, #tpu.memory_space<vmem>>, vector<1x8x8xbf16>
    %10 = vector.shape_cast %9 : vector<1x8x8xbf16> to vector<8x8xbf16>
    %cst_11 = arith.constant dense<0.000000e+00> : vector<8x384xf32>
    %11 = tpu.matmul %10, %8, %cst_11 {dimension_numbers = #tpu.dot_dimension_numbers<[1], [0], [0], [1], [0, 0, 1, 1], [], []>} : vector<8x8xbf16>, vector<8x384xbf16>, vector<8x384xf32> -> vector<8x384xf32>
    %12 = arith.addf %6, %11 : vector<8x384xf32>
    %c0_12 = arith.constant 0 : index
    %c0_13 = arith.constant 0 : index
    %c2 = arith.constant 2 : index
    %13 = vector.load %arg1[%c0_12, %c0_13, %c2] : memref<1x8x512xbf16, #tpu.memory_space<vmem>>, vector<1x8x384xbf16>
    %14 = vector.shape_cast %13 : vector<1x8x384xbf16> to vector<8x384xbf16>
    %c2_14 = arith.constant 2 : index
    %c0_15 = arith.constant 0 : index
    %c0_16 = arith.constant 0 : index
    %15 = vector.load %arg2[%c2_14, %c0_15, %c0_16] : memref<9x8x8xbf16, #tpu.memory_space<vmem>>, vector<1x8x8xbf16>
    %16 = vector.shape_cast %15 : vector<1x8x8xbf16> to vector<8x8xbf16>
    %cst_17 = arith.constant dense<0.000000e+00> : vector<8x384xf32>
    %17 = tpu.matmul %16, %14, %cst_17 {dimension_numbers = #tpu.dot_dimension_numbers<[1], [0], [0], [1], [0, 0, 1, 1], [], []>} : vector<8x8xbf16>, vector<8x384xbf16>, vector<8x384xf32> -> vector<8x384xf32>
    %18 = arith.addf %12, %17 : vector<8x384xf32>
    %c0_18 = arith.constant 0 : index
    %c0_19 = arith.constant 0 : index
    %c18 = arith.constant 18 : index
    %19 = vector.load %arg1[%c0_18, %c0_19, %c18] : memref<1x8x512xbf16, #tpu.memory_space<vmem>>, vector<1x8x384xbf16>
    %20 = vector.shape_cast %19 : vector<1x8x384xbf16> to vector<8x384xbf16>
    %c3 = arith.constant 3 : index
    %c0_20 = arith.constant 0 : index
    %c0_21 = arith.constant 0 : index
    %21 = vector.load %arg2[%c3, %c0_20, %c0_21] : memref<9x8x8xbf16, #tpu.memory_space<vmem>>, vector<1x8x8xbf16>
    %22 = vector.shape_cast %21 : vector<1x8x8xbf16> to vector<8x8xbf16>
    %cst_22 = arith.constant dense<0.000000e+00> : vector<8x384xf32>
    %23 = tpu.matmul %22, %20, %cst_22 {dimension_numbers = #tpu.dot_dimension_numbers<[1], [0], [0], [1], [0, 0, 1, 1], [], []>} : vector<8x8xbf16>, vector<8x384xbf16>, vector<8x384xf32> -> vector<8x384xf32>
    %24 = arith.addf %18, %23 : vector<8x384xf32>
    %c0_23 = arith.constant 0 : index
    %c0_24 = arith.constant 0 : index
    %c19 = arith.constant 19 : index
    %25 = vector.load %arg1[%c0_23, %c0_24, %c19] : memref<1x8x512xbf16, #tpu.memory_space<vmem>>, vector<1x8x384xbf16>
    %26 = vector.shape_cast %25 : vector<1x8x384xbf16> to vector<8x384xbf16>
    %c4 = arith.constant 4 : index
    %c0_25 = arith.constant 0 : index
    %c0_26 = arith.constant 0 : index
    %27 = vector.load %arg2[%c4, %c0_25, %c0_26] : memref<9x8x8xbf16, #tpu.memory_space<vmem>>, vector<1x8x8xbf16>
    %28 = vector.shape_cast %27 : vector<1x8x8xbf16> to vector<8x8xbf16>
    %cst_27 = arith.constant dense<0.000000e+00> : vector<8x384xf32>
    %29 = tpu.matmul %28, %26, %cst_27 {dimension_numbers = #tpu.dot_dimension_numbers<[1], [0], [0], [1], [0, 0, 1, 1], [], []>} : vector<8x8xbf16>, vector<8x384xbf16>, vector<8x384xf32> -> vector<8x384xf32>
    %30 = arith.addf %24, %29 : vector<8x384xf32>
    %c0_28 = arith.constant 0 : index
    %c0_29 = arith.constant 0 : index
    %c20 = arith.constant 20 : index
    %31 = vector.load %arg1[%c0_28, %c0_29, %c20] : memref<1x8x512xbf16, #tpu.memory_space<vmem>>, vector<1x8x384xbf16>
    %32 = vector.shape_cast %31 : vector<1x8x384xbf16> to vector<8x384xbf16>
    %c5 = arith.constant 5 : index
    %c0_30 = arith.constant 0 : index
    %c0_31 = arith.constant 0 : index
    %33 = vector.load %arg2[%c5, %c0_30, %c0_31] : memref<9x8x8xbf16, #tpu.memory_space<vmem>>, vector<1x8x8xbf16>
    %34 = vector.shape_cast %33 : vector<1x8x8xbf16> to vector<8x8xbf16>
    %cst_32 = arith.constant dense<0.000000e+00> : vector<8x384xf32>
    %35 = tpu.matmul %34, %32, %cst_32 {dimension_numbers = #tpu.dot_dimension_numbers<[1], [0], [0], [1], [0, 0, 1, 1], [], []>} : vector<8x8xbf16>, vector<8x384xbf16>, vector<8x384xf32> -> vector<8x384xf32>
    %36 = arith.addf %30, %35 : vector<8x384xf32>
    %c0_33 = arith.constant 0 : index
    %c0_34 = arith.constant 0 : index
    %c36 = arith.constant 36 : index
    %37 = vector.load %arg1[%c0_33, %c0_34, %c36] : memref<1x8x512xbf16, #tpu.memory_space<vmem>>, vector<1x8x384xbf16>
    %38 = vector.shape_cast %37 : vector<1x8x384xbf16> to vector<8x384xbf16>
    %c6 = arith.constant 6 : index
    %c0_35 = arith.constant 0 : index
    %c0_36 = arith.constant 0 : index
    %39 = vector.load %arg2[%c6, %c0_35, %c0_36] : memref<9x8x8xbf16, #tpu.memory_space<vmem>>, vector<1x8x8xbf16>
    %40 = vector.shape_cast %39 : vector<1x8x8xbf16> to vector<8x8xbf16>
    %cst_37 = arith.constant dense<0.000000e+00> : vector<8x384xf32>
    %41 = tpu.matmul %40, %38, %cst_37 {dimension_numbers = #tpu.dot_dimension_numbers<[1], [0], [0], [1], [0, 0, 1, 1], [], []>} : vector<8x8xbf16>, vector<8x384xbf16>, vector<8x384xf32> -> vector<8x384xf32>
    %42 = arith.addf %36, %41 : vector<8x384xf32>
    %c0_38 = arith.constant 0 : index
    %c0_39 = arith.constant 0 : index
    %c37 = arith.constant 37 : index
    %43 = vector.load %arg1[%c0_38, %c0_39, %c37] : memref<1x8x512xbf16, #tpu.memory_space<vmem>>, vector<1x8x384xbf16>
    %44 = vector.shape_cast %43 : vector<1x8x384xbf16> to vector<8x384xbf16>
    %c7 = arith.constant 7 : index
    %c0_40 = arith.constant 0 : index
    %c0_41 = arith.constant 0 : index
    %45 = vector.load %arg2[%c7, %c0_40, %c0_41] : memref<9x8x8xbf16, #tpu.memory_space<vmem>>, vector<1x8x8xbf16>
    %46 = vector.shape_cast %45 : vector<1x8x8xbf16> to vector<8x8xbf16>
    %cst_42 = arith.constant dense<0.000000e+00> : vector<8x384xf32>
    %47 = tpu.matmul %46, %44, %cst_42 {dimension_numbers = #tpu.dot_dimension_numbers<[1], [0], [0], [1], [0, 0, 1, 1], [], []>} : vector<8x8xbf16>, vector<8x384xbf16>, vector<8x384xf32> -> vector<8x384xf32>
    %48 = arith.addf %42, %47 : vector<8x384xf32>
    %c0_43 = arith.constant 0 : index
    %c0_44 = arith.constant 0 : index
    %c38 = arith.constant 38 : index
    %49 = vector.load %arg1[%c0_43, %c0_44, %c38] : memref<1x8x512xbf16, #tpu.memory_space<vmem>>, vector<1x8x384xbf16>
    %50 = vector.shape_cast %49 : vector<1x8x384xbf16> to vector<8x384xbf16>
    %c8 = arith.constant 8 : index
    %c0_45 = arith.constant 0 : index
    %c0_46 = arith.constant 0 : index
    %51 = vector.load %arg2[%c8, %c0_45, %c0_46] : memref<9x8x8xbf16, #tpu.memory_space<vmem>>, vector<1x8x8xbf16>
    %52 = vector.shape_cast %51 : vector<1x8x8xbf16> to vector<8x8xbf16>
    %cst_47 = arith.constant dense<0.000000e+00> : vector<8x384xf32>
    %53 = tpu.matmul %52, %50, %cst_47 {dimension_numbers = #tpu.dot_dimension_numbers<[1], [0], [0], [1], [0, 0, 1, 1], [], []>} : vector<8x8xbf16>, vector<8x384xbf16>, vector<8x384xf32> -> vector<8x384xf32>
    %54 = arith.addf %48, %53 : vector<8x384xf32>
    %c0_48 = arith.constant 0 : index
    %c0_49 = arith.constant 0 : index
    %55 = vector.load %arg3[%c0_48, %c0_49] : memref<8x1xf32, #tpu.memory_space<vmem>>, vector<8x1xf32>
    %56 = vector.broadcast %55 : vector<8x1xf32> to vector<8x384xf32>
    %57 = arith.addf %54, %56 : vector<8x384xf32>
    %cst_50 = arith.constant 0.000000e+00 : f32
    %58 = vector.broadcast %cst_50 : f32 to vector<8x384xf32>
    %59 = arith.cmpf oge, %57, %58 : vector<8x384xf32>
    %cst_51 = arith.constant 2.000000e-01 : f32
    %60 = vector.broadcast %cst_51 : f32 to vector<8x384xf32>
    %61 = arith.mulf %60, %57 : vector<8x384xf32>
    %62 = arith.select %59, %57, %61 : vector<8x384xi1>, vector<8x384xf32>
    %c0_52 = arith.constant 0 : index
    %c0_53 = arith.constant 0 : index
    %c0_54 = arith.constant 0 : index
    %63 = vector.load %arg4[%c0_52, %c0_53, %c0_54] : memref<1x8x384xf32, #tpu.memory_space<vmem>>, vector<1x8x384xf32>
    %64 = vector.shape_cast %63 : vector<1x8x384xf32> to vector<8x384xf32>
    %65 = vector.shape_cast %62 : vector<8x384xf32> to vector<1x8x384xf32>
    tpu.vector_store %arg4[%c0_52, %c0_53, %c0_54], %65 {strides = array<i32>} : memref<1x8x384xf32, #tpu.memory_space<vmem>>, vector<1x8x384xf32>,
    return
  }
  func.func @transform_0(%arg0: i32) -> (i32, i32, i32) {
    %c0_i32 = arith.constant 0 : i32
    %c0_i32_0 = arith.constant 0 : i32
    %c0_i32_1 = arith.constant 0 : i32
    return %arg0, %c0_i32, %c0_i32_0 : i32, i32, i32
  }
  func.func @transform_1(%arg0: i32) -> (i32, i32, i32) {
    %c0_i32 = arith.constant 0 : i32
    %c0_i32_0 = arith.constant 0 : i32
    %c0_i32_1 = arith.constant 0 : i32
    %c0_i32_2 = arith.constant 0 : i32
    return %c0_i32, %c0_i32_0, %c0_i32_1 : i32, i32, i32
  }
  func.func @transform_2(%arg0: i32) -> (i32, i32) {
    %c0_i32 = arith.constant 0 : i32
    %c0_i32_0 = arith.constant 0 : i32
    %c0_i32_1 = arith.constant 0 : i32
    return %c0_i32, %c0_i32_0 : i32, i32
  }
  func.func @transform_3(%arg0: i32) -> (i32, i32, i32) {
    %c0_i32 = arith.constant 0 : i32
    %c0_i32_0 = arith.constant 0 : i32
    %c0_i32_1 = arith.constant 0 : i32
    return %arg0, %c0_i32, %c0_i32_0 : i32, i32, i32
  }
}

</mosaic_0001>

<llo_original>
// kernel: tpu_custom_call.1
$region0: #{tpu_custom_call.1}
  #allocation0 [shape = 'u32[]', space=smem, size = 0x4, offset = 0x4, fixed_abs, tag = 'smem constant byte address 0x4 - core index']
  #allocation1 [shape = 'u32[144,128]{1,0:T(1,128)}', space=vmem, size = 0x12000, scoped, tag = 'internal scratch']
  %s0 = inlined_call_operand.vmem [shape: bf16[2,8,512], index: 0, kind: input, shape index: {}]
  %s1 = inlined_call_operand.vmem [shape: bf16[9,8,8], index: 1, kind: input, shape index: {}]
  %s2 = inlined_call_operand.vmem [shape: f32[8,1], index: 2, kind: input, shape index: {}]
  %s3 = inlined_call_operand.hbm [shape: f32[2,8,384], index: 3, kind: output, shape index: {}]
  %s4 = sld [smem:[#allocation0]]
  $region45: #{tpu_custom_call.1} parent=0
    _
  %s6 = ssub.s32 1, %s4
  %s7 = scalar_select 0, %s6, %s4
  $region1: #{tpu_custom_call.1} parent=0
    #allocation2 [shape = 'u8[24576]{0}', space=vmem, size = 0x6000, scoped, tag = 'output window, operand 0']
    #allocation3 [shape = 's32[2]{0}', space=sflag, size = 0x8, scoped, tag = 'scoped memory for tpu_custom_call.1']
    %8 = vsyncpa [#allocation3], 0
    %s9 = scalar_lea.sflag [#allocation3], 1
    %10 = vsyncpa %s9, 0
    loop: start=0, step=1, limit=4
    $region2: #{tpu_custom_call.1} parent=1 // loop_pre_header
      _
    $region3: #{tpu_custom_call.1} parent=1 // loop_header
      %s12 = sphi 0, %s16
      %p13 = scmp.ge.s32.totalorder %s12, 4
      %s22 = sphi 0, %s24
      %s25 = sphi 0, %s22
      %s26 = sphi 0, %s25
      %s42 = sphi 0, %s26
      %s46 = sphi 0, %s46
      %s48 = sphi 0, %s46
      %s49 = sphi 0, %s48
      %s63 = sphi 0, %s49
      %s67 = sphi 0, %s67
      %s69 = sphi 0, %s67
      %s70 = sphi 0, %s69
      %s84 = sphi 0, %s70
      %s90 = sphi 0, %s92
      %s93 = sphi 0, %s90
      %s94 = sphi 0, %s93
      %s110 = sphi 0, %s94
    $region4: #{tpu_custom_call.1} parent=1 // loop_header_branch
      %15 = sbr.rel (%p13) target = $region8
    $region5: #{tpu_custom_call.1} parent=1 // loop_body
      %s17 = ssub.s32 %s12, 1
      %s18 = ssub.s32 %s12, 2
      %s19 = sadd.s32 %s12, 1
      %s20 = ssub.s32 %s12, %s19
      %p21 = scmp.eq.s32.totalorder %s20, 0
      %s23 = sadd.s32 %s22, 1
      %s24 = scalar_select %p21, %s22, %s23
      %p27 = pneg %p21
      %p28 = scmp.eq.s32.totalorder %s12, 1
      %p29 = por %p27, %p28
      %p30 = scmp.ne.s32.totalorder %s22, %s25
      %p31 = scmp.eq.s32.totalorder %s12, 0
      %p32 = por %p30, %p31
      %p33 = scmp.ne.s32.totalorder %s22, %s25
      %p34 = scmp.eq.s32.totalorder %s17, 1
      %p35 = por %p33, %p34
      %p36 = scmp.ne.s32.totalorder %s25, %s26
      %p37 = scmp.eq.s32.totalorder %s17, 0
      %p38 = por %p36, %p37
      %p39 = scmp.ne.s32.totalorder %s25, %s26
      %p40 = scmp.eq.s32.totalorder %s18, 1
      %p41 = por %p39, %p40
      %p43 = scmp.ne.s32.totalorder %s26, %s42
      %p44 = scmp.eq.s32.totalorder %s18, 0
      %p45 = por %p43, %p44
      %s47 = sadd.s32 %s46, 1
      %p50 = scmp.eq.s32.totalorder %s12, 1
      %p51 = scmp.ne.s32.totalorder %s46, %s48
      %p52 = scmp.eq.s32.totalorder %s12, 0
      %p53 = por %p51, %p52
      %p54 = scmp.ne.s32.totalorder %s46, %s48
      %p55 = scmp.eq.s32.totalorder %s17, 1
      %p56 = por %p54, %p55
      %p57 = scmp.ne.s32.totalorder %s48, %s49
      %p58 = scmp.eq.s32.totalorder %s17, 0
      %p59 = por %p57, %p58
      %p60 = scmp.ne.s32.totalorder %s48, %s49
      %p61 = scmp.eq.s32.totalorder %s18, 1
      %p62 = por %p60, %p61
      %p64 = scmp.ne.s32.totalorder %s49, %s63
      %p65 = scmp.eq.s32.totalorder %s18, 0
      %p66 = por %p64, %p65
      %s68 = sadd.s32 %s67, 1
      %p71 = scmp.eq.s32.totalorder %s12, 1
      %p72 = scmp.ne.s32.totalorder %s67, %s69
      %p73 = scmp.eq.s32.totalorder %s12, 0
      %p74 = por %p72, %p73
      %p75 = scmp.ne.s32.totalorder %s67, %s69
      %p76 = scmp.eq.s32.totalorder %s17, 1
      %p77 = por %p75, %p76
      %p78 = scmp.ne.s32.totalorder %s69, %s70
      %p79 = scmp.eq.s32.totalorder %s17, 0
      %p80 = por %p78, %p79
      %p81 = scmp.ne.s32.totalorder %s69, %s70
      %p82 = scmp.eq.s32.totalorder %s18, 1
      %p83 = por %p81, %p82
      %p85 = scmp.ne.s32.totalorder %s70, %s84
      %p86 = scmp.eq.s32.totalorder %s18, 0
      %p87 = por %p85, %p86
      %s88 = ssub.s32 %s12, %s19
      %p89 = scmp.eq.s32.totalorder %s88, 0
      %s91 = sadd.s32 %s90, 1
      %s92 = scalar_select %p89, %s90, %s91
      %p95 = pneg %p89
      %p96 = scmp.eq.s32.totalorder %s12, 1
      %p97 = por %p95, %p96
      %p98 = scmp.ne.s32.totalorder %s90, %s93
      %p99 = scmp.eq.s32.totalorder %s12, 0
      %p100 = por %p98, %p99
      %p101 = scmp.ne.s32.totalorder %s90, %s93
      %p102 = scmp.eq.s32.totalorder %s17, 1
      %p103 = por %p101, %p102
      %p104 = scmp.ne.s32.totalorder %s93, %s94
      %p105 = scmp.eq.s32.totalorder %s17, 0
      %p106 = por %p104, %p105
      %p107 = scmp.ne.s32.totalorder %s93, %s94
      %p108 = scmp.eq.s32.totalorder %s18, 1
      %p109 = por %p107, %p108
      %p111 = scmp.ne.s32.totalorder %s94, %s110
      %p112 = scmp.eq.s32.totalorder %s18, 0
      %p113 = por %p111, %p112
      %p114 = scmp.le.s32.totalorder 1, %s12
      %p115 = scmp.lt.s32.totalorder %s12, 3
      %p116 = pnand %p114, %p115
      %p117 = pneg %p116
      // Predicated region
      $region9: #{tpu_custom_call.1} parent=5 // pred_check
        _
      $region10: #{tpu_custom_call.1} parent=5 // pred_check_branch
        %119 = sbr.rel (%p116) target = $region12
      $region11: #{tpu_custom_call.1} parent=5 // pred_region
        %s120 = ssub.s32 %s12, 1
        // Predicated region
        $region13: #{tpu_custom_call.1} parent=11 // pred_check
          %p121 = pneg %p59
        $region14: #{tpu_custom_call.1} parent=11 // pred_check_branch
          %123 = sbr.rel (%p121) target = $region16
        $region15: #{tpu_custom_call.1} parent=11 // pred_region
          _
        $region16: #{tpu_custom_call.1} parent=11 // pred_fallthru
          _
        // Predicated region
        $region17: #{tpu_custom_call.1} parent=11 // pred_check
          %p124 = pneg %p80
        $region18: #{tpu_custom_call.1} parent=11 // pred_check_branch
          %126 = sbr.rel (%p124) target = $region20
        $region19: #{tpu_custom_call.1} parent=11 // pred_region
          _
        $region20: #{tpu_custom_call.1} parent=11 // pred_fallthru
          _
      $region12: #{tpu_custom_call.1} parent=5 // pred_fallthru
        _
      %p127 = scmp.lt.s32.totalorder %s12, 2
      // Predicated region
      $region21: #{tpu_custom_call.1} parent=5 // pred_check
        %p128 = pneg %p127
      $region22: #{tpu_custom_call.1} parent=5 // pred_check_branch
        %130 = sbr.rel (%p128) target = $region24
      $region23: #{tpu_custom_call.1} parent=5 // pred_region
        // Predicated region
        $region25: #{tpu_custom_call.1} parent=23 // pred_check
          %p131 = pneg %p32
        $region26: #{tpu_custom_call.1} parent=23 // pred_check_branch
          %133 = sbr.rel (%p131) target = $region28
        $region27: #{tpu_custom_call.1} parent=23 // pred_region
          %p134 = scmp.lt.s32.totalorder %s12, 1
          %s135 = scalar_select %p134, %s12, 1
          %s136 = smul.addr %s135, 4
          %s137 = smul.addr %s136, 4
          %s138 = scalar_lea.vmem %s0, %s137
        $region28: #{tpu_custom_call.1} parent=23 // pred_fallthru
          _
      $region24: #{tpu_custom_call.1} parent=5 // pred_fallthru
        _
      %p139 = scmp.le.s32.totalorder 1, %s12
      %p140 = scmp.lt.s32.totalorder %s12, 3
      %p141 = pnand %p139, %p140
      %p142 = pneg %p141
      // Predicated region
      $region29: #{tpu_custom_call.1} parent=5 // pred_check
        _
      $region30: #{tpu_custom_call.1} parent=5 // pred_check_branch
        %144 = sbr.rel (%p141) target = $region32
      $region31: #{tpu_custom_call.1} parent=5 // pred_region
        %s145 = ssub.s32 %s12, 1
        %p146 = scmp.lt.s32.totalorder %s17, 1
        %s147 = scalar_select %p146, %s17, 1
        %s148 = smul.addr %s147, 4
        %s149 = smul.addr %s148, 4
        %s150 = scalar_lea.vmem %s0, %s149
        %p151 = pneg %p38
        %p152 = pneg %p35
        %p153 = pneg %p59
        %p154 = pneg %p56
        %p155 = pneg %p80
        %p156 = pneg %p77
        %p157 = pneg %p106
        %p158 = pneg %p103
        %s159 = sand.u32 %s93, 1
        %s160 = scalar_lea.sflag [#allocation3], %s159
        %s161 = sand.u32 %s93, 1
        %s162 = smul.addr %s161, 24
        %s163 = scalar_lea.vmem [#allocation2], %s162
        %p164 = scmp.lt.s32.totalorder %s17, 1
        %s165 = scalar_select %p164, %s17, 1
        %s166 = smul.addr %s165, 4
        %s167 = smul.addr %s166, 4
        %s168 = scalar_lea.vmem %s0, %s167
        %v170 = vld [vmem:[%s168] sm:$0xff]
        %v171 = vld [vmem:[%s168 + $0x8] sm:$0xf]
        %v172 = vld [vmem:[%s1] sm:$0xf]
        %v173 = vld [vmem:[%s168] sm:$0xff]
        %v174 = vld [vmem:[%s168 + $0x8] sm:$0xff]
        %s175 = scalar_lea.vmem %s1, 4
        %v176 = vld [vmem:[%s175] sm:$0xf]
        %v179 = vunpack.c.l.b16 %v173
        %v180 = vunpack.c.h.b16 %v173
        %v181 = vunpack.c.l.b16 %v174
        %v182 = vunpack.c.h.b16 %v174
        %v183 = vpack.c.b16 %v179, %v179
        %v184 = vpack.c.b16 %v180, %v180
        %v185 = vpack.c.b16 %v181, %v181
        %v186 = vpack.c.b16 %v182, %v182
        %187 = vrot.lane.b32.xlu0 %v183, 127
        %v188 = vpop.permute.xlu0 %187
        %189 = vrot.lane.b32.xlu0 %v184, 127
        %v190 = vpop.permute.xlu0 %189
        %191 = vrot.lane.b32.xlu0 %v185, 127
        %v192 = vpop.permute.xlu0 %191
        %193 = vrot.lane.b32.xlu0 %v186, 127
        %v194 = vpop.permute.xlu0 %193
        %vm195 = vcmask 1039360
        %v196 = vsel %vm195, %v188, %v190
        %v197 = vsel %vm195, %v190, %v192
        %v198 = vsel %vm195, %v192, %v194
        %vm199 = vcmask 64512
        %v201 = vsel %vm199, %v176, 0
        %vm203 = vcmask 1043456
        %v205 = vsel %vm203, %v196, 0
        %v208 = vsel %vm203, %v197, 0
        %v211 = vsel %vm203, %v198, 0
        %213 = vmatprep.subr.bf16.mxu0 %v208
        %214 = vmatpush1.bf16.msra.mxu0 %v205
        %215 = vmatprep.subr.bf16.mxu0 0
        %216 = vmatpush1.bf16.msra.mxu0 0
        %217 = vmatprep.subr.bf16.mxu0 0
        %218 = vmatpush1.bf16.msra.mxu0 0
        %219 = vmatprep.subr.bf16.mxu0 0
        %220 = vmatpush1.bf16.msra.mxu0 0
        %221 = vmatprep.subr.bf16.mxu0 0
        %222 = vmatpush1.bf16.msra.mxu0 0
        %223 = vmatprep.subr.bf16.mxu0 0
        %224 = vmatpush1.bf16.msra.mxu0 0
        %225 = vmatprep.subr.bf16.mxu0 0
        %226 = vmatpush1.bf16.msra.mxu0 0
        %227 = vmatprep.subr.bf16.mxu0 0
        %228 = vmatpush1.bf16.msra.mxu0 0
        %229 = vmatprep.subr.bf16.mxu0 0
        %230 = vmatpush1.bf16.msra.mxu0 0
        %231 = vmatprep.subr.bf16.mxu0 0
        %232 = vmatpush1.bf16.msra.mxu0 0
        %233 = vmatprep.subr.bf16.mxu0 0
        %234 = vmatpush1.bf16.msra.mxu0 0
        %235 = vmatprep.subr.bf16.mxu0 0
        %236 = vmatpush1.bf16.msra.mxu0 0
        %237 = vmatprep.subr.bf16.mxu0 0
        %238 = vmatpush1.bf16.msra.mxu0 0
        %239 = vmatprep.subr.bf16.mxu0 0
        %240 = vmatpush1.bf16.msra.mxu0 0
        %241 = vmatprep.subr.bf16.mxu0 0
        %242 = vmatpush1.bf16.msra.mxu0 0
        %243 = vmatprep.subr.bf16.mxu0 0
        %244 = vmatpush1.bf16.msra.mxu0 0
        %245 = vmatprep.mubr.bf16.mxu0 0
        %246 = vmatmul.mubr.bf16.gmra.mrb[0].mxu0 %v201
        %v247 = vpop.f32.mrb[0].mxu0
        %v248 = vadd.f32 0.0, %v247
        %v249 = vpop.f32.mrb[0].mxu0
        %v250 = vadd.f32 0.0, %v249
        %v251 = vpop.f32.mrb[0].mxu0
        %v252 = vpop.f32.mrb[0].mxu0
        %253 = vdwg.mxu0
        %254 = vmatprep.subr.bf16.mxu0 0
        %255 = vmatpush1.bf16.msra.mxu0 %v211
        %256 = vmatprep.subr.bf16.mxu0 0
        %257 = vmatpush1.bf16.msra.mxu0 0
        %258 = vmatprep.subr.bf16.mxu0 0
        %259 = vmatpush1.bf16.msra.mxu0 0
        %260 = vmatprep.subr.bf16.mxu0 0
        %261 = vmatpush1.bf16.msra.mxu0 0
        %262 = vmatprep.subr.bf16.mxu0 0
        %263 = vmatpush1.bf16.msra.mxu0 0
        %264 = vmatprep.subr.bf16.mxu0 0
        %265 = vmatpush1.bf16.msra.mxu0 0
        %266 = vmatprep.subr.bf16.mxu0 0
        %267 = vmatpush1.bf16.msra.mxu0 0
        %268 = vmatprep.subr.bf16.mxu0 0
        %269 = vmatpush1.bf16.msra.mxu0 0
        %270 = vmatprep.subr.bf16.mxu0 0
        %271 = vmatpush1.bf16.msra.mxu0 0
        %272 = vmatprep.subr.bf16.mxu0 0
        %273 = vmatpush1.bf16.msra.mxu0 0
        %274 = vmatprep.subr.bf16.mxu0 0
        %275 = vmatpush1.bf16.msra.mxu0 0
        %276 = vmatprep.subr.bf16.mxu0 0
        %277 = vmatpush1.bf16.msra.mxu0 0
        %278 = vmatprep.subr.bf16.mxu0 0
        %279 = vmatpush1.bf16.msra.mxu0 0
        %280 = vmatprep.subr.bf16.mxu0 0
        %281 = vmatpush1.bf16.msra.mxu0 0
        %282 = vmatprep.subr.bf16.mxu0 0
        %283 = vmatpush1.bf16.msra.mxu0 0
        %284 = vmatprep.subr.bf16.mxu0 0
        %285 = vmatpush1.bf16.msra.mxu0 0
        %286 = vmatprep.mubr.bf16.mxu0 0
        %287 = vmatmul.mubr.bf16.gmra.mrb[0].mxu0 %v201
        %v288 = vpop.f32.mrb[0].mxu0
        %v289 = vadd.f32 0.0, %v288
        %v290 = vpop.f32.mrb[0].mxu0
        %v291 = vpop.f32.mrb[0].mxu0
        %v292 = vpop.f32.mrb[0].mxu0
        %293 = vdwg.mxu0
        %v296 = vunpack.c.l.b16 %v170
        %v297 = vunpack.c.h.b16 %v170
        %v298 = vunpack.c.l.b16 %v171
        %v299 = vpack.c.b16 %v296, %v296
        %v300 = vpack.c.b16 %v297, %v297
        %v301 = vpack.c.b16 %v298, %v298
        %v303 = vsel %vm199, %v172, 0
        %v306 = vsel %vm203, %v299, 0
        %v309 = vsel %vm203, %v300, 0
        %v312 = vsel %vm203, %v301, 0
        %314 = vmatprep.subr.bf16.mxu0 %v309
        %315 = vmatpush1.bf16.msra.mxu0 %v306
        %316 = vmatprep.subr.bf16.mxu0 0
        %317 = vmatpush1.bf16.msra.mxu0 0
        %318 = vmatprep.subr.bf16.mxu0 0
        %319 = vmatpush1.bf16.msra.mxu0 0
        %320 = vmatprep.subr.bf16.mxu0 0
        %321 = vmatpush1.bf16.msra.mxu0 0
        %322 = vmatprep.subr.bf16.mxu0 0
        %323 = vmatpush1.bf16.msra.mxu0 0
        %324 = vmatprep.subr.bf16.mxu0 0
        %325 = vmatpush1.bf16.msra.mxu0 0
        %326 = vmatprep.subr.bf16.mxu0 0
        %327 = vmatpush1.bf16.msra.mxu0 0
        %328 = vmatprep.subr.bf16.mxu0 0
        %329 = vmatpush1.bf16.msra.mxu0 0
        %330 = vmatprep.subr.bf16.mxu0 0
        %331 = vmatpush1.bf16.msra.mxu0 0
        %332 = vmatprep.subr.bf16.mxu0 0
        %333 = vmatpush1.bf16.msra.mxu0 0
        %334 = vmatprep.subr.bf16.mxu0 0
        %335 = vmatpush1.bf16.msra.mxu0 0
        %336 = vmatprep.subr.bf16.mxu0 0
        %337 = vmatpush1.bf16.msra.mxu0 0
        %338 = vmatprep.subr.bf16.mxu0 0
        %339 = vmatpush1.bf16.msra.mxu0 0
        %340 = vmatprep.subr.bf16.mxu0 0
        %341 = vmatpush1.bf16.msra.mxu0 0
        %342 = vmatprep.subr.bf16.mxu0 0
        %343 = vmatpush1.bf16.msra.mxu0 0
        %344 = vmatprep.subr.bf16.mxu0 0
        %345 = vmatpush1.bf16.msra.mxu0 0
        %346 = vmatprep.mubr.bf16.mxu0 0
        %347 = vmatmul.mubr.bf16.gmra.mrb[0].mxu0 %v303
        %v348 = vpop.f32.mrb[0].mxu0
        %v349 = vadd.f32 %v248, %v348
        %v350 = vpop.f32.mrb[0].mxu0
        %v351 = vadd.f32 %v250, %v350
        %v352 = vpop.f32.mrb[0].mxu0
        %v353 = vpop.f32.mrb[0].mxu0
        %354 = vdwg.mxu0
        %355 = vmatprep.subr.bf16.mxu0 0
        %356 = vmatpush1.bf16.msra.mxu0 %v312
        %357 = vmatprep.subr.bf16.mxu0 0
        %358 = vmatpush1.bf16.msra.mxu0 0
        %359 = vmatprep.subr.bf16.mxu0 0
        %360 = vmatpush1.bf16.msra.mxu0 0
        %361 = vmatprep.subr.bf16.mxu0 0
        %362 = vmatpush1.bf16.msra.mxu0 0
        %363 = vmatprep.subr.bf16.mxu0 0
        %364 = vmatpush1.bf16.msra.mxu0 0
        %365 = vmatprep.subr.bf16.mxu0 0
        %366 = vmatpush1.bf16.msra.mxu0 0
        %367 = vmatprep.subr.bf16.mxu0 0
        %368 = vmatpush1.bf16.msra.mxu0 0
        %369 = vmatprep.subr.bf16.mxu0 0
        %370 = vmatpush1.bf16.msra.mxu0 0
        %371 = vmatprep.subr.bf16.mxu0 0
        %372 = vmatpush1.bf16.msra.mxu0 0
        %373 = vmatprep.subr.bf16.mxu0 0
        %374 = vmatpush1.bf16.msra.mxu0 0
        %375 = vmatprep.subr.bf16.mxu0 0
        %376 = vmatpush1.bf16.msra.mxu0 0
        %377 = vmatprep.subr.bf16.mxu0 0
        %378 = vmatpush1.bf16.msra.mxu0 0
        %379 = vmatprep.subr.bf16.mxu0 0
        %380 = vmatpush1.bf16.msra.mxu0 0
        %381 = vmatprep.subr.bf16.mxu0 0
        %382 = vmatpush1.bf16.msra.mxu0 0
        %383 = vmatprep.subr.bf16.mxu0 0
        %384 = vmatpush1.bf16.msra.mxu0 0
        %385 = vmatprep.subr.bf16.mxu0 0
        %386 = vmatpush1.bf16.msra.mxu0 0
        %387 = vmatprep.mubr.bf16.mxu0 0
        %388 = vmatmul.mubr.bf16.gmra.mrb[0].mxu0 %v303
        %v389 = vpop.f32.mrb[0].mxu0
        %v390 = vadd.f32 %v289, %v389
        %v391 = vpop.f32.mrb[0].mxu0
        %v392 = vpop.f32.mrb[0].mxu0
        %v393 = vpop.f32.mrb[0].mxu0
        %394 = vdwg.mxu0
        %s395 = scalar_lea.vmem %s1, 8
        %v396 = vld [vmem:[%s395] sm:$0xf]
        %397 = vrot.lane.b32.xlu0 %v183, 126
        %v398 = vpop.permute.xlu0 %397
        %399 = vrot.lane.b32.xlu0 %v184, 126
        %v400 = vpop.permute.xlu0 %399
        %401 = vrot.lane.b32.xlu0 %v185, 126
        %v402 = vpop.permute.xlu0 %401
        %403 = vrot.lane.b32.xlu0 %v186, 126
        %v404 = vpop.permute.xlu0 %403
        %vm405 = vcmask 1031168
        %v406 = vsel %vm405, %v398, %v400
        %v407 = vsel %vm405, %v400, %v402
        %v408 = vsel %vm405, %v402, %v404
        %v410 = vsel %vm199, %v396, 0
        %v413 = vsel %vm203, %v406, 0
        %v416 = vsel %vm203, %v407, 0
        %v419 = vsel %vm203, %v408, 0
        %421 = vmatprep.subr.bf16.mxu0 %v416
        %422 = vmatpush1.bf16.msra.mxu0 %v413
        %423 = vmatprep.subr.bf16.mxu0 0
        %424 = vmatpush1.bf16.msra.mxu0 0
        %425 = vmatprep.subr.bf16.mxu0 0
        %426 = vmatpush1.bf16.msra.mxu0 0
        %427 = vmatprep.subr.bf16.mxu0 0
        %428 = vmatpush1.bf16.msra.mxu0 0
        %429 = vmatprep.subr.bf16.mxu0 0
        %430 = vmatpush1.bf16.msra.mxu0 0
        %431 = vmatprep.subr.bf16.mxu0 0
        %432 = vmatpush1.bf16.msra.mxu0 0
        %433 = vmatprep.subr.bf16.mxu0 0
        %434 = vmatpush1.bf16.msra.mxu0 0
        %435 = vmatprep.subr.bf16.mxu0 0
        %436 = vmatpush1.bf16.msra.mxu0 0
        %437 = vmatprep.subr.bf16.mxu0 0
        %438 = vmatpush1.bf16.msra.mxu0 0
        %439 = vmatprep.subr.bf16.mxu0 0
        %440 = vmatpush1.bf16.msra.mxu0 0
        %441 = vmatprep.subr.bf16.mxu0 0
        %442 = vmatpush1.bf16.msra.mxu0 0
        %443 = vmatprep.subr.bf16.mxu0 0
        %444 = vmatpush1.bf16.msra.mxu0 0
        %445 = vmatprep.subr.bf16.mxu0 0
        %446 = vmatpush1.bf16.msra.mxu0 0
        %447 = vmatprep.subr.bf16.mxu0 0
        %448 = vmatpush1.bf16.msra.mxu0 0
        %449 = vmatprep.subr.bf16.mxu0 0
        %450 = vmatpush1.bf16.msra.mxu0 0
        %451 = vmatprep.subr.bf16.mxu0 0
        %452 = vmatpush1.bf16.msra.mxu0 0
        %453 = vmatprep.mubr.bf16.mxu0 0
        %454 = vmatmul.mubr.bf16.gmra.mrb[0].mxu0 %v410
        %v455 = vpop.f32.mrb[0].mxu0
        %v456 = vadd.f32 0.0, %v455
        %v457 = vpop.f32.mrb[0].mxu0
        %v458 = vadd.f32 0.0, %v457
        %v459 = vpop.f32.mrb[0].mxu0
        %v460 = vpop.f32.mrb[0].mxu0
        %461 = vdwg.mxu0
        %462 = vmatprep.subr.bf16.mxu0 0
        %463 = vmatpush1.bf16.msra.mxu0 %v419
        %464 = vmatprep.subr.bf16.mxu0 0
        %465 = vmatpush1.bf16.msra.mxu0 0
        %466 = vmatprep.subr.bf16.mxu0 0
        %467 = vmatpush1.bf16.msra.mxu0 0
        %468 = vmatprep.subr.bf16.mxu0 0
        %469 = vmatpush1.bf16.msra.mxu0 0
        %470 = vmatprep.subr.bf16.mxu0 0
        %471 = vmatpush1.bf16.msra.mxu0 0
        %472 = vmatprep.subr.bf16.mxu0 0
        %473 = vmatpush1.bf16.msra.mxu0 0
        %474 = vmatprep.subr.bf16.mxu0 0
        %475 = vmatpush1.bf16.msra.mxu0 0
        %476 = vmatprep.subr.bf16.mxu0 0
        %477 = vmatpush1.bf16.msra.mxu0 0
        %478 = vmatprep.subr.bf16.mxu0 0
        %479 = vmatpush1.bf16.msra.mxu0 0
        %480 = vmatprep.subr.bf16.mxu0 0
        %481 = vmatpush1.bf16.msra.mxu0 0
        %482 = vmatprep.subr.bf16.mxu0 0
        %483 = vmatpush1.bf16.msra.mxu0 0
        %484 = vmatprep.subr.bf16.mxu0 0
        %485 = vmatpush1.bf16.msra.mxu0 0
        %486 = vmatprep.subr.bf16.mxu0 0
        %487 = vmatpush1.bf16.msra.mxu0 0
        %488 = vmatprep.subr.bf16.mxu0 0
        %489 = vmatpush1.bf16.msra.mxu0 0
        %490 = vmatprep.subr.bf16.mxu0 0
        %491 = vmatpush1.bf16.msra.mxu0 0
        %492 = vmatprep.subr.bf16.mxu0 0
        %493 = vmatpush1.bf16.msra.mxu0 0
        %494 = vmatprep.mubr.bf16.mxu0 0
        %495 = vmatmul.mubr.bf16.gmra.mrb[0].mxu0 %v410
        %v496 = vpop.f32.mrb[0].mxu0
        %v497 = vadd.f32 0.0, %v496
        %v498 = vpop.f32.mrb[0].mxu0
        %v499 = vpop.f32.mrb[0].mxu0
        %v500 = vpop.f32.mrb[0].mxu0
        %501 = vdwg.mxu0
        %v502 = vadd.f32 %v349, %v456
        %v503 = vadd.f32 %v351, %v458
        %v504 = vadd.f32 %v390, %v497
        %s505 = scalar_lea.vmem %s1, 12
        %v506 = vld [vmem:[%s505] sm:$0xf]
        %507 = vrot.lane.b32.xlu0 %v183, 110
        %v508 = vpop.permute.xlu0 %507
        %509 = vrot.lane.b32.xlu0 %v184, 110
        %v510 = vpop.permute.xlu0 %509
        %511 = vrot.lane.b32.xlu0 %v185, 110
        %v512 = vpop.permute.xlu0 %511
        %513 = vrot.lane.b32.xlu0 %v186, 110
        %v514 = vpop.permute.xlu0 %513
        %vm515 = vcmask 900096
        %v516 = vsel %vm515, %v508, %v510
        %v517 = vsel %vm515, %v510, %v512
        %v518 = vsel %vm515, %v512, %v514
        %v520 = vsel %vm199, %v506, 0
        %v523 = vsel %vm203, %v516, 0
        %v526 = vsel %vm203, %v517, 0
        %v529 = vsel %vm203, %v518, 0
        %531 = vmatprep.subr.bf16.mxu0 %v526
        %532 = vmatpush1.bf16.msra.mxu0 %v523
        %533 = vmatprep.subr.bf16.mxu0 0
        %534 = vmatpush1.bf16.msra.mxu0 0
        %535 = vmatprep.subr.bf16.mxu0 0
        %536 = vmatpush1.bf16.msra.mxu0 0
        %537 = vmatprep.subr.bf16.mxu0 0
        %538 = vmatpush1.bf16.msra.mxu0 0
        %539 = vmatprep.subr.bf16.mxu0 0
        %540 = vmatpush1.bf16.msra.mxu0 0
        %541 = vmatprep.subr.bf16.mxu0 0
        %542 = vmatpush1.bf16.msra.mxu0 0
        %543 = vmatprep.subr.bf16.mxu0 0
        %544 = vmatpush1.bf16.msra.mxu0 0
        %545 = vmatprep.subr.bf16.mxu0 0
        %546 = vmatpush1.bf16.msra.mxu0 0
        %547 = vmatprep.subr.bf16.mxu0 0
        %548 = vmatpush1.bf16.msra.mxu0 0
        %549 = vmatprep.subr.bf16.mxu0 0
        %550 = vmatpush1.bf16.msra.mxu0 0
        %551 = vmatprep.subr.bf16.mxu0 0
        %552 = vmatpush1.bf16.msra.mxu0 0
        %553 = vmatprep.subr.bf16.mxu0 0
        %554 = vmatpush1.bf16.msra.mxu0 0
        %555 = vmatprep.subr.bf16.mxu0 0
        %556 = vmatpush1.bf16.msra.mxu0 0
        %557 = vmatprep.subr.bf16.mxu0 0
        %558 = vmatpush1.bf16.msra.mxu0 0
        %559 = vmatprep.subr.bf16.mxu0 0
        %560 = vmatpush1.bf16.msra.mxu0 0
        %561 = vmatprep.subr.bf16.mxu0 0
        %562 = vmatpush1.bf16.msra.mxu0 0
        %563 = vmatprep.mubr.bf16.mxu0 0
        %564 = vmatmul.mubr.bf16.gmra.mrb[0].mxu0 %v520
        %v565 = vpop.f32.mrb[0].mxu0
        %v566 = vadd.f32 0.0, %v565
        %v567 = vpop.f32.mrb[0].mxu0
        %v568 = vadd.f32 0.0, %v567
        %v569 = vpop.f32.mrb[0].mxu0
        %v570 = vpop.f32.mrb[0].mxu0
        %571 = vdwg.mxu0
        %572 = vmatprep.subr.bf16.mxu0 0
        %573 = vmatpush1.bf16.msra.mxu0 %v529
        %574 = vmatprep.subr.bf16.mxu0 0
        %575 = vmatpush1.bf16.msra.mxu0 0
        %576 = vmatprep.subr.bf16.mxu0 0
        %577 = vmatpush1.bf16.msra.mxu0 0
        %578 = vmatprep.subr.bf16.mxu0 0
        %579 = vmatpush1.bf16.msra.mxu0 0
        %580 = vmatprep.subr.bf16.mxu0 0
        %581 = vmatpush1.bf16.msra.mxu0 0
        %582 = vmatprep.subr.bf16.mxu0 0
        %583 = vmatpush1.bf16.msra.mxu0 0
        %584 = vmatprep.subr.bf16.mxu0 0
        %585 = vmatpush1.bf16.msra.mxu0 0
        %586 = vmatprep.subr.bf16.mxu0 0
        %587 = vmatpush1.bf16.msra.mxu0 0
        %588 = vmatprep.subr.bf16.mxu0 0
        %589 = vmatpush1.bf16.msra.mxu0 0
        %590 = vmatprep.subr.bf16.mxu0 0
        %591 = vmatpush1.bf16.msra.mxu0 0
        %592 = vmatprep.subr.bf16.mxu0 0
        %593 = vmatpush1.bf16.msra.mxu0 0
        %594 = vmatprep.subr.bf16.mxu0 0
        %595 = vmatpush1.bf16.msra.mxu0 0
        %596 = vmatprep.subr.bf16.mxu0 0
        %597 = vmatpush1.bf16.msra.mxu0 0
        %598 = vmatprep.subr.bf16.mxu0 0
        %599 = vmatpush1.bf16.msra.mxu0 0
        %600 = vmatprep.subr.bf16.mxu0 0
        %601 = vmatpush1.bf16.msra.mxu0 0
        %602 = vmatprep.subr.bf16.mxu0 0
        %603 = vmatpush1.bf16.msra.mxu0 0
        %604 = vmatprep.mubr.bf16.mxu0 0
        %605 = vmatmul.mubr.bf16.gmra.mrb[0].mxu0 %v520
        %v606 = vpop.f32.mrb[0].mxu0
        %v607 = vadd.f32 0.0, %v606
        %v608 = vpop.f32.mrb[0].mxu0
        %v609 = vpop.f32.mrb[0].mxu0
        %v610 = vpop.f32.mrb[0].mxu0
        %611 = vdwg.mxu0
        %v612 = vadd.f32 %v502, %v566
        %v613 = vadd.f32 %v503, %v568
        %v614 = vadd.f32 %v504, %v607
        %s615 = scalar_lea.vmem %s1, 16
        %v616 = vld [vmem:[%s615] sm:$0xf]
        %617 = vrot.lane.b32.xlu0 %v183, 109
        %v618 = vpop.permute.xlu0 %617
        %619 = vrot.lane.b32.xlu0 %v184, 109
        %v620 = vpop.permute.xlu0 %619
        %621 = vrot.lane.b32.xlu0 %v185, 109
        %v622 = vpop.permute.xlu0 %621
        %623 = vrot.lane.b32.xlu0 %v186, 109
        %v624 = vpop.permute.xlu0 %623
        %vm625 = vcmask 891904
        %v626 = vsel %vm625, %v618, %v620
        %v627 = vsel %vm625, %v620, %v622
        %v628 = vsel %vm625, %v622, %v624
        %v630 = vsel %vm199, %v616, 0
        %v633 = vsel %vm203, %v626, 0
        %v636 = vsel %vm203, %v627, 0
        %v639 = vsel %vm203, %v628, 0
        %641 = vmatprep.subr.bf16.mxu0 %v636
        %642 = vmatpush1.bf16.msra.mxu0 %v633
        %643 = vmatprep.subr.bf16.mxu0 0
        %644 = vmatpush1.bf16.msra.mxu0 0
        %645 = vmatprep.subr.bf16.mxu0 0
        %646 = vmatpush1.bf16.msra.mxu0 0
        %647 = vmatprep.subr.bf16.mxu0 0
        %648 = vmatpush1.bf16.msra.mxu0 0
        %649 = vmatprep.subr.bf16.mxu0 0
        %650 = vmatpush1.bf16.msra.mxu0 0
        %651 = vmatprep.subr.bf16.mxu0 0
        %652 = vmatpush1.bf16.msra.mxu0 0
        %653 = vmatprep.subr.bf16.mxu0 0
        %654 = vmatpush1.bf16.msra.mxu0 0
        %655 = vmatprep.subr.bf16.mxu0 0
        %656 = vmatpush1.bf16.msra.mxu0 0
        %657 = vmatprep.subr.bf16.mxu0 0
        %658 = vmatpush1.bf16.msra.mxu0 0
        %659 = vmatprep.subr.bf16.mxu0 0
        %660 = vmatpush1.bf16.msra.mxu0 0
        %661 = vmatprep.subr.bf16.mxu0 0
        %662 = vmatpush1.bf16.msra.mxu0 0
        %663 = vmatprep.subr.bf16.mxu0 0
        %664 = vmatpush1.bf16.msra.mxu0 0
        %665 = vmatprep.subr.bf16.mxu0 0
        %666 = vmatpush1.bf16.msra.mxu0 0
        %667 = vmatprep.subr.bf16.mxu0 0
        %668 = vmatpush1.bf16.msra.mxu0 0
        %669 = vmatprep.subr.bf16.mxu0 0
        %670 = vmatpush1.bf16.msra.mxu0 0
        %671 = vmatprep.subr.bf16.mxu0 0
        %672 = vmatpush1.bf16.msra.mxu0 0
        %673 = vmatprep.mubr.bf16.mxu0 0
        %674 = vmatmul.mubr.bf16.gmra.mrb[0].mxu0 %v630
        %v675 = vpop.f32.mrb[0].mxu0
        %v676 = vadd.f32 0.0, %v675
        %v677 = vpop.f32.mrb[0].mxu0
        %v678 = vadd.f32 0.0, %v677
        %v679 = vpop.f32.mrb[0].mxu0
        %v680 = vpop.f32.mrb[0].mxu0
        %681 = vdwg.mxu0
        %682 = vmatprep.subr.bf16.mxu0 0
        %683 = vmatpush1.bf16.msra.mxu0 %v639
        %684 = vmatprep.subr.bf16.mxu0 0
        %685 = vmatpush1.bf16.msra.mxu0 0
        %686 = vmatprep.subr.bf16.mxu0 0
        %687 = vmatpush1.bf16.msra.mxu0 0
        %688 = vmatprep.subr.bf16.mxu0 0
        %689 = vmatpush1.bf16.msra.mxu0 0
        %690 = vmatprep.subr.bf16.mxu0 0
        %691 = vmatpush1.bf16.msra.mxu0 0
        %692 = vmatprep.subr.bf16.mxu0 0
        %693 = vmatpush1.bf16.msra.mxu0 0
        %694 = vmatprep.subr.bf16.mxu0 0
        %695 = vmatpush1.bf16.msra.mxu0 0
        %696 = vmatprep.subr.bf16.mxu0 0
        %697 = vmatpush1.bf16.msra.mxu0 0
        %698 = vmatprep.subr.bf16.mxu0 0
        %699 = vmatpush1.bf16.msra.mxu0 0
        %700 = vmatprep.subr.bf16.mxu0 0
        %701 = vmatpush1.bf16.msra.mxu0 0
        %702 = vmatprep.subr.bf16.mxu0 0
        %703 = vmatpush1.bf16.msra.mxu0 0
        %704 = vmatprep.subr.bf16.mxu0 0
        %705 = vmatpush1.bf16.msra.mxu0 0
        %706 = vmatprep.subr.bf16.mxu0 0
        %707 = vmatpush1.bf16.msra.mxu0 0
        %708 = vmatprep.subr.bf16.mxu0 0
        %709 = vmatpush1.bf16.msra.mxu0 0
        %710 = vmatprep.subr.bf16.mxu0 0
        %711 = vmatpush1.bf16.msra.mxu0 0
        %712 = vmatprep.subr.bf16.mxu0 0
        %713 = vmatpush1.bf16.msra.mxu0 0
        %714 = vmatprep.mubr.bf16.mxu0 0
        %715 = vmatmul.mubr.bf16.gmra.mrb[0].mxu0 %v630
        %v716 = vpop.f32.mrb[0].mxu0
        %v717 = vadd.f32 0.0, %v716
        %v718 = vpop.f32.mrb[0].mxu0
        %v719 = vpop.f32.mrb[0].mxu0
        %v720 = vpop.f32.mrb[0].mxu0
        %721 = vdwg.mxu0
        %v722 = vadd.f32 %v612, %v676
        %v723 = vadd.f32 %v613, %v678
        %v724 = vadd.f32 %v614, %v717
        %s725 = scalar_lea.vmem %s1, 20
        %v726 = vld [vmem:[%s725] sm:$0xf]
        %727 = vrot.lane.b32.xlu0 %v183, 108
        %v728 = vpop.permute.xlu0 %727
        %729 = vrot.lane.b32.xlu0 %v184, 108
        %v730 = vpop.permute.xlu0 %729
        %731 = vrot.lane.b32.xlu0 %v185, 108
        %v732 = vpop.permute.xlu0 %731
        %733 = vrot.lane.b32.xlu0 %v186, 108
        %v734 = vpop.permute.xlu0 %733
        %vm735 = vcmask 883712
        %v736 = vsel %vm735, %v728, %v730
        %v737 = vsel %vm735, %v730, %v732
        %v738 = vsel %vm735, %v732, %v734
        %v740 = vsel %vm199, %v726, 0
        %v743 = vsel %vm203, %v736, 0
        %v746 = vsel %vm203, %v737, 0
        %v749 = vsel %vm203, %v738, 0
        %751 = vmatprep.subr.bf16.mxu0 %v746
        %752 = vmatpush1.bf16.msra.mxu0 %v743
        %753 = vmatprep.subr.bf16.mxu0 0
        %754 = vmatpush1.bf16.msra.mxu0 0
        %755 = vmatprep.subr.bf16.mxu0 0
        %756 = vmatpush1.bf16.msra.mxu0 0
        %757 = vmatprep.subr.bf16.mxu0 0
        %758 = vmatpush1.bf16.msra.mxu0 0
        %759 = vmatprep.subr.bf16.mxu0 0
        %760 = vmatpush1.bf16.msra.mxu0 0
        %761 = vmatprep.subr.bf16.mxu0 0
        %762 = vmatpush1.bf16.msra.mxu0 0
        %763 = vmatprep.subr.bf16.mxu0 0
        %764 = vmatpush1.bf16.msra.mxu0 0
        %765 = vmatprep.subr.bf16.mxu0 0
        %766 = vmatpush1.bf16.msra.mxu0 0
        %767 = vmatprep.subr.bf16.mxu0 0
        %768 = vmatpush1.bf16.msra.mxu0 0
        %769 = vmatprep.subr.bf16.mxu0 0
        %770 = vmatpush1.bf16.msra.mxu0 0
        %771 = vmatprep.subr.bf16.mxu0 0
        %772 = vmatpush1.bf16.msra.mxu0 0
        %773 = vmatprep.subr.bf16.mxu0 0
        %774 = vmatpush1.bf16.msra.mxu0 0
        %775 = vmatprep.subr.bf16.mxu0 0
        %776 = vmatpush1.bf16.msra.mxu0 0
        %777 = vmatprep.subr.bf16.mxu0 0
        %778 = vmatpush1.bf16.msra.mxu0 0
        %779 = vmatprep.subr.bf16.mxu0 0
        %780 = vmatpush1.bf16.msra.mxu0 0
        %781 = vmatprep.subr.bf16.mxu0 0
        %782 = vmatpush1.bf16.msra.mxu0 0
        %783 = vmatprep.mubr.bf16.mxu0 0
        %784 = vmatmul.mubr.bf16.gmra.mrb[0].mxu0 %v740
        %v785 = vpop.f32.mrb[0].mxu0
        %v786 = vadd.f32 0.0, %v785
        %v787 = vpop.f32.mrb[0].mxu0
        %v788 = vadd.f32 0.0, %v787
        %v789 = vpop.f32.mrb[0].mxu0
        %v790 = vpop.f32.mrb[0].mxu0
        %791 = vdwg.mxu0
        %792 = vmatprep.subr.bf16.mxu0 0
        %793 = vmatpush1.bf16.msra.mxu0 %v749
        %794 = vmatprep.subr.bf16.mxu0 0
        %795 = vmatpush1.bf16.msra.mxu0 0
        %796 = vmatprep.subr.bf16.mxu0 0
        %797 = vmatpush1.bf16.msra.mxu0 0
        %798 = vmatprep.subr.bf16.mxu0 0
        %799 = vmatpush1.bf16.msra.mxu0 0
        %800 = vmatprep.subr.bf16.mxu0 0
        %801 = vmatpush1.bf16.msra.mxu0 0
        %802 = vmatprep.subr.bf16.mxu0 0
        %803 = vmatpush1.bf16.msra.mxu0 0
        %804 = vmatprep.subr.bf16.mxu0 0
        %805 = vmatpush1.bf16.msra.mxu0 0
        %806 = vmatprep.subr.bf16.mxu0 0
        %807 = vmatpush1.bf16.msra.mxu0 0
        %808 = vmatprep.subr.bf16.mxu0 0
        %809 = vmatpush1.bf16.msra.mxu0 0
        %810 = vmatprep.subr.bf16.mxu0 0
        %811 = vmatpush1.bf16.msra.mxu0 0
        %812 = vmatprep.subr.bf16.mxu0 0
        %813 = vmatpush1.bf16.msra.mxu0 0
        %814 = vmatprep.subr.bf16.mxu0 0
        %815 = vmatpush1.bf16.msra.mxu0 0
        %816 = vmatprep.subr.bf16.mxu0 0
        %817 = vmatpush1.bf16.msra.mxu0 0
        %818 = vmatprep.subr.bf16.mxu0 0
        %819 = vmatpush1.bf16.msra.mxu0 0
        %820 = vmatprep.subr.bf16.mxu0 0
        %821 = vmatpush1.bf16.msra.mxu0 0
        %822 = vmatprep.subr.bf16.mxu0 0
        %823 = vmatpush1.bf16.msra.mxu0 0
        %824 = vmatprep.mubr.bf16.mxu0 0
        %825 = vmatmul.mubr.bf16.gmra.mrb[0].mxu0 %v740
        %v826 = vpop.f32.mrb[0].mxu0
        %v827 = vadd.f32 0.0, %v826
        %v828 = vpop.f32.mrb[0].mxu0
        %v829 = vpop.f32.mrb[0].mxu0
        %v830 = vpop.f32.mrb[0].mxu0
        %831 = vdwg.mxu0
        %v832 = vadd.f32 %v722, %v786
        %v833 = vadd.f32 %v723, %v788
        %v834 = vadd.f32 %v724, %v827
        %s835 = scalar_lea.vmem %s1, 24
        %v836 = vld [vmem:[%s835] sm:$0xf]
        %837 = vrot.lane.b32.xlu0 %v183, 92
        %v838 = vpop.permute.xlu0 %837
        %839 = vrot.lane.b32.xlu0 %v184, 92
        %v840 = vpop.permute.xlu0 %839
        %841 = vrot.lane.b32.xlu0 %v185, 92
        %v842 = vpop.permute.xlu0 %841
        %843 = vrot.lane.b32.xlu0 %v186, 92
        %v844 = vpop.permute.xlu0 %843
        %vm845 = vcmask 752640
        %v846 = vsel %vm845, %v838, %v840
        %v847 = vsel %vm845, %v840, %v842
        %v848 = vsel %vm845, %v842, %v844
        %v850 = vsel %vm199, %v836, 0
        %v853 = vsel %vm203, %v846, 0
        %v856 = vsel %vm203, %v847, 0
        %v859 = vsel %vm203, %v848, 0
        %861 = vmatprep.subr.bf16.mxu0 %v856
        %862 = vmatpush1.bf16.msra.mxu0 %v853
        %863 = vmatprep.subr.bf16.mxu0 0
        %864 = vmatpush1.bf16.msra.mxu0 0
        %865 = vmatprep.subr.bf16.mxu0 0
        %866 = vmatpush1.bf16.msra.mxu0 0
        %867 = vmatprep.subr.bf16.mxu0 0
        %868 = vmatpush1.bf16.msra.mxu0 0
        %869 = vmatprep.subr.bf16.mxu0 0
        %870 = vmatpush1.bf16.msra.mxu0 0
        %871 = vmatprep.subr.bf16.mxu0 0
        %872 = vmatpush1.bf16.msra.mxu0 0
        %873 = vmatprep.subr.bf16.mxu0 0
        %874 = vmatpush1.bf16.msra.mxu0 0
        %875 = vmatprep.subr.bf16.mxu0 0
        %876 = vmatpush1.bf16.msra.mxu0 0
        %877 = vmatprep.subr.bf16.mxu0 0
        %878 = vmatpush1.bf16.msra.mxu0 0
        %879 = vmatprep.subr.bf16.mxu0 0
        %880 = vmatpush1.bf16.msra.mxu0 0
        %881 = vmatprep.subr.bf16.mxu0 0
        %882 = vmatpush1.bf16.msra.mxu0 0
        %883 = vmatprep.subr.bf16.mxu0 0
        %884 = vmatpush1.bf16.msra.mxu0 0
        %885 = vmatprep.subr.bf16.mxu0 0
        %886 = vmatpush1.bf16.msra.mxu0 0
        %887 = vmatprep.subr.bf16.mxu0 0
        %888 = vmatpush1.bf16.msra.mxu0 0
        %889 = vmatprep.subr.bf16.mxu0 0
        %890 = vmatpush1.bf16.msra.mxu0 0
        %891 = vmatprep.subr.bf16.mxu0 0
        %892 = vmatpush1.bf16.msra.mxu0 0
        %893 = vmatprep.mubr.bf16.mxu0 0
        %894 = vmatmul.mubr.bf16.gmra.mrb[0].mxu0 %v850
        %v895 = vpop.f32.mrb[0].mxu0
        %v896 = vadd.f32 0.0, %v895
        %v897 = vpop.f32.mrb[0].mxu0
        %v898 = vadd.f32 0.0, %v897
        %v899 = vpop.f32.mrb[0].mxu0
        %v900 = vpop.f32.mrb[0].mxu0
        %901 = vdwg.mxu0
        %902 = vmatprep.subr.bf16.mxu0 0
        %903 = vmatpush1.bf16.msra.mxu0 %v859
        %904 = vmatprep.subr.bf16.mxu0 0
        %905 = vmatpush1.bf16.msra.mxu0 0
        %906 = vmatprep.subr.bf16.mxu0 0
        %907 = vmatpush1.bf16.msra.mxu0 0
        %908 = vmatprep.subr.bf16.mxu0 0
        %909 = vmatpush1.bf16.msra.mxu0 0
        %910 = vmatprep.subr.bf16.mxu0 0
        %911 = vmatpush1.bf16.msra.mxu0 0
        %912 = vmatprep.subr.bf16.mxu0 0
        %913 = vmatpush1.bf16.msra.mxu0 0
        %914 = vmatprep.subr.bf16.mxu0 0
        %915 = vmatpush1.bf16.msra.mxu0 0
        %916 = vmatprep.subr.bf16.mxu0 0
        %917 = vmatpush1.bf16.msra.mxu0 0
        %918 = vmatprep.subr.bf16.mxu0 0
        %919 = vmatpush1.bf16.msra.mxu0 0
        %920 = vmatprep.subr.bf16.mxu0 0
        %921 = vmatpush1.bf16.msra.mxu0 0
        %922 = vmatprep.subr.bf16.mxu0 0
        %923 = vmatpush1.bf16.msra.mxu0 0
        %924 = vmatprep.subr.bf16.mxu0 0
        %925 = vmatpush1.bf16.msra.mxu0 0
        %926 = vmatprep.subr.bf16.mxu0 0
        %927 = vmatpush1.bf16.msra.mxu0 0
        %928 = vmatprep.subr.bf16.mxu0 0
        %929 = vmatpush1.bf16.msra.mxu0 0
        %930 = vmatprep.subr.bf16.mxu0 0
        %931 = vmatpush1.bf16.msra.mxu0 0
        %932 = vmatprep.subr.bf16.mxu0 0
        %933 = vmatpush1.bf16.msra.mxu0 0
        %934 = vmatprep.mubr.bf16.mxu0 0
        %935 = vmatmul.mubr.bf16.gmra.mrb[0].mxu0 %v850
        %v936 = vpop.f32.mrb[0].mxu0
        %v937 = vadd.f32 0.0, %v936
        %v938 = vpop.f32.mrb[0].mxu0
        %v939 = vpop.f32.mrb[0].mxu0
        %v940 = vpop.f32.mrb[0].mxu0
        %941 = vdwg.mxu0
        %v942 = vadd.f32 %v832, %v896
        %v943 = vadd.f32 %v833, %v898
        %v944 = vadd.f32 %v834, %v937
        %s945 = scalar_lea.vmem %s1, 28
        %v946 = vld [vmem:[%s945] sm:$0xf]
        %947 = vrot.lane.b32.xlu0 %v183, 91
        %v948 = vpop.permute.xlu0 %947
        %949 = vrot.lane.b32.xlu0 %v184, 91
        %v950 = vpop.permute.xlu0 %949
        %951 = vrot.lane.b32.xlu0 %v185, 91
        %v952 = vpop.permute.xlu0 %951
        %953 = vrot.lane.b32.xlu0 %v186, 91
        %v954 = vpop.permute.xlu0 %953
        %vm955 = vcmask 744448
        %v956 = vsel %vm955, %v948, %v950
        %v957 = vsel %vm955, %v950, %v952
        %v958 = vsel %vm955, %v952, %v954
        %v960 = vsel %vm199, %v946, 0
        %v963 = vsel %vm203, %v956, 0
        %v966 = vsel %vm203, %v957, 0
        %v969 = vsel %vm203, %v958, 0
        %971 = vmatprep.subr.bf16.mxu0 %v966
        %972 = vmatpush1.bf16.msra.mxu0 %v963
        %973 = vmatprep.subr.bf16.mxu0 0
        %974 = vmatpush1.bf16.msra.mxu0 0
        %975 = vmatprep.subr.bf16.mxu0 0
        %976 = vmatpush1.bf16.msra.mxu0 0
        %977 = vmatprep.subr.bf16.mxu0 0
        %978 = vmatpush1.bf16.msra.mxu0 0
        %979 = vmatprep.subr.bf16.mxu0 0
        %980 = vmatpush1.bf16.msra.mxu0 0
        %981 = vmatprep.subr.bf16.mxu0 0
        %982 = vmatpush1.bf16.msra.mxu0 0
        %983 = vmatprep.subr.bf16.mxu0 0
        %984 = vmatpush1.bf16.msra.mxu0 0
        %985 = vmatprep.subr.bf16.mxu0 0
        %986 = vmatpush1.bf16.msra.mxu0 0
        %987 = vmatprep.subr.bf16.mxu0 0
        %988 = vmatpush1.bf16.msra.mxu0 0
        %989 = vmatprep.subr.bf16.mxu0 0
        %990 = vmatpush1.bf16.msra.mxu0 0
        %991 = vmatprep.subr.bf16.mxu0 0
        %992 = vmatpush1.bf16.msra.mxu0 0
        %993 = vmatprep.subr.bf16.mxu0 0
        %994 = vmatpush1.bf16.msra.mxu0 0
        %995 = vmatprep.subr.bf16.mxu0 0
        %996 = vmatpush1.bf16.msra.mxu0 0
        %997 = vmatprep.subr.bf16.mxu0 0
        %998 = vmatpush1.bf16.msra.mxu0 0
        %999 = vmatprep.subr.bf16.mxu0 0
        %1000 = vmatpush1.bf16.msra.mxu0 0
        %1001 = vmatprep.subr.bf16.mxu0 0
        %1002 = vmatpush1.bf16.msra.mxu0 0
        %1003 = vmatprep.mubr.bf16.mxu0 0
        %1004 = vmatmul.mubr.bf16.gmra.mrb[0].mxu0 %v960
        %v1005 = vpop.f32.mrb[0].mxu0
        %v1006 = vadd.f32 0.0, %v1005
        %v1007 = vpop.f32.mrb[0].mxu0
        %v1008 = vadd.f32 0.0, %v1007
        %v1009 = vpop.f32.mrb[0].mxu0
        %v1010 = vpop.f32.mrb[0].mxu0
        %1011 = vdwg.mxu0
        %1012 = vmatprep.subr.bf16.mxu0 0
        %1013 = vmatpush1.bf16.msra.mxu0 %v969
        %1014 = vmatprep.subr.bf16.mxu0 0
        %1015 = vmatpush1.bf16.msra.mxu0 0
        %1016 = vmatprep.subr.bf16.mxu0 0
        %1017 = vmatpush1.bf16.msra.mxu0 0
        %1018 = vmatprep.subr.bf16.mxu0 0
        %1019 = vmatpush1.bf16.msra.mxu0 0
        %1020 = vmatprep.subr.bf16.mxu0 0
        %1021 = vmatpush1.bf16.msra.mxu0 0
        %1022 = vmatprep.subr.bf16.mxu0 0
        %1023 = vmatpush1.bf16.msra.mxu0 0
        %1024 = vmatprep.subr.bf16.mxu0 0
        %1025 = vmatpush1.bf16.msra.mxu0 0
        %1026 = vmatprep.subr.bf16.mxu0 0
        %1027 = vmatpush1.bf16.msra.mxu0 0
        %1028 = vmatprep.subr.bf16.mxu0 0
        %1029 = vmatpush1.bf16.msra.mxu0 0
        %1030 = vmatprep.subr.bf16.mxu0 0
        %1031 = vmatpush1.bf16.msra.mxu0 0
        %1032 = vmatprep.subr.bf16.mxu0 0
        %1033 = vmatpush1.bf16.msra.mxu0 0
        %1034 = vmatprep.subr.bf16.mxu0 0
        %1035 = vmatpush1.bf16.msra.mxu0 0
        %1036 = vmatprep.subr.bf16.mxu0 0
        %1037 = vmatpush1.bf16.msra.mxu0 0
        %1038 = vmatprep.subr.bf16.mxu0 0
        %1039 = vmatpush1.bf16.msra.mxu0 0
        %1040 = vmatprep.subr.bf16.mxu0 0
        %1041 = vmatpush1.bf16.msra.mxu0 0
        %1042 = vmatprep.subr.bf16.mxu0 0
        %1043 = vmatpush1.bf16.msra.mxu0 0
        %1044 = vmatprep.mubr.bf16.mxu0 0
        %1045 = vmatmul.mubr.bf16.gmra.mrb[0].mxu0 %v960
        %v1046 = vpop.f32.mrb[0].mxu0
        %v1047 = vadd.f32 0.0, %v1046
        %v1048 = vpop.f32.mrb[0].mxu0
        %v1049 = vpop.f32.mrb[0].mxu0
        %v1050 = vpop.f32.mrb[0].mxu0
        %1051 = vdwg.mxu0
        %v1052 = vadd.f32 %v942, %v1006
        %v1053 = vadd.f32 %v943, %v1008
        %v1054 = vadd.f32 %v944, %v1047
        %s1055 = scalar_lea.vmem %s1, 32
        %v1056 = vld [vmem:[%s1055] sm:$0xf]
        %1057 = vrot.lane.b32.xlu0 %v183, 90
        %v1058 = vpop.permute.xlu0 %1057
        %1059 = vrot.lane.b32.xlu0 %v184, 90
        %v1060 = vpop.permute.xlu0 %1059
        %1061 = vrot.lane.b32.xlu0 %v185, 90
        %v1062 = vpop.permute.xlu0 %1061
        %1063 = vrot.lane.b32.xlu0 %v186, 90
        %v1064 = vpop.permute.xlu0 %1063
        %vm1065 = vcmask 736256
        %v1066 = vsel %vm1065, %v1058, %v1060
        %v1067 = vsel %vm1065, %v1060, %v1062
        %v1068 = vsel %vm1065, %v1062, %v1064
        %v1070 = vsel %vm199, %v1056, 0
        %v1073 = vsel %vm203, %v1066, 0
        %v1076 = vsel %vm203, %v1067, 0
        %v1079 = vsel %vm203, %v1068, 0
        %1081 = vmatprep.subr.bf16.mxu0 %v1076
        %1082 = vmatpush1.bf16.msra.mxu0 %v1073
        %1083 = vmatprep.subr.bf16.mxu0 0
        %1084 = vmatpush1.bf16.msra.mxu0 0
        %1085 = vmatprep.subr.bf16.mxu0 0
        %1086 = vmatpush1.bf16.msra.mxu0 0
        %1087 = vmatprep.subr.bf16.mxu0 0
        %1088 = vmatpush1.bf16.msra.mxu0 0
        %1089 = vmatprep.subr.bf16.mxu0 0
        %1090 = vmatpush1.bf16.msra.mxu0 0
        %1091 = vmatprep.subr.bf16.mxu0 0
        %1092 = vmatpush1.bf16.msra.mxu0 0
        %1093 = vmatprep.subr.bf16.mxu0 0
        %1094 = vmatpush1.bf16.msra.mxu0 0
        %1095 = vmatprep.subr.bf16.mxu0 0
        %1096 = vmatpush1.bf16.msra.mxu0 0
        %1097 = vmatprep.subr.bf16.mxu0 0
        %1098 = vmatpush1.bf16.msra.mxu0 0
        %1099 = vmatprep.subr.bf16.mxu0 0
        %1100 = vmatpush1.bf16.msra.mxu0 0
        %1101 = vmatprep.subr.bf16.mxu0 0
        %1102 = vmatpush1.bf16.msra.mxu0 0
        %1103 = vmatprep.subr.bf16.mxu0 0
        %1104 = vmatpush1.bf16.msra.mxu0 0
        %1105 = vmatprep.subr.bf16.mxu0 0
        %1106 = vmatpush1.bf16.msra.mxu0 0
        %1107 = vmatprep.subr.bf16.mxu0 0
        %1108 = vmatpush1.bf16.msra.mxu0 0
        %1109 = vmatprep.subr.bf16.mxu0 0
        %1110 = vmatpush1.bf16.msra.mxu0 0
        %1111 = vmatprep.subr.bf16.mxu0 0
        %1112 = vmatpush1.bf16.msra.mxu0 0
        %1113 = vmatprep.mubr.bf16.mxu0 0
        %1114 = vmatmul.mubr.bf16.gmra.mrb[0].mxu0 %v1070
        %v1115 = vpop.f32.mrb[0].mxu0
        %v1116 = vadd.f32 0.0, %v1115
        %v1117 = vpop.f32.mrb[0].mxu0
        %v1118 = vadd.f32 0.0, %v1117
        %v1119 = vpop.f32.mrb[0].mxu0
        %v1120 = vpop.f32.mrb[0].mxu0
        %1121 = vdwg.mxu0
        %1122 = vmatprep.subr.bf16.mxu0 0
        %1123 = vmatpush1.bf16.msra.mxu0 %v1079
        %1124 = vmatprep.subr.bf16.mxu0 0
        %1125 = vmatpush1.bf16.msra.mxu0 0
        %1126 = vmatprep.subr.bf16.mxu0 0
        %1127 = vmatpush1.bf16.msra.mxu0 0
        %1128 = vmatprep.subr.bf16.mxu0 0
        %1129 = vmatpush1.bf16.msra.mxu0 0
        %1130 = vmatprep.subr.bf16.mxu0 0
        %1131 = vmatpush1.bf16.msra.mxu0 0
        %1132 = vmatprep.subr.bf16.mxu0 0
        %1133 = vmatpush1.bf16.msra.mxu0 0
        %1134 = vmatprep.subr.bf16.mxu0 0
        %1135 = vmatpush1.bf16.msra.mxu0 0
        %1136 = vmatprep.subr.bf16.mxu0 0
        %1137 = vmatpush1.bf16.msra.mxu0 0
        %1138 = vmatprep.subr.bf16.mxu0 0
        %1139 = vmatpush1.bf16.msra.mxu0 0
        %1140 = vmatprep.subr.bf16.mxu0 0
        %1141 = vmatpush1.bf16.msra.mxu0 0
        %1142 = vmatprep.subr.bf16.mxu0 0
        %1143 = vmatpush1.bf16.msra.mxu0 0
        %1144 = vmatprep.subr.bf16.mxu0 0
        %1145 = vmatpush1.bf16.msra.mxu0 0
        %1146 = vmatprep.subr.bf16.mxu0 0
        %1147 = vmatpush1.bf16.msra.mxu0 0
        %1148 = vmatprep.subr.bf16.mxu0 0
        %1149 = vmatpush1.bf16.msra.mxu0 0
        %1150 = vmatprep.subr.bf16.mxu0 0
        %1151 = vmatpush1.bf16.msra.mxu0 0
        %1152 = vmatprep.subr.bf16.mxu0 0
        %1153 = vmatpush1.bf16.msra.mxu0 0
        %1154 = vmatprep.mubr.bf16.mxu0 0
        %1155 = vmatmul.mubr.bf16.gmra.mrb[0].mxu0 %v1070
        %v1156 = vpop.f32.mrb[0].mxu0
        %v1157 = vadd.f32 0.0, %v1156
        %v1158 = vpop.f32.mrb[0].mxu0
        %v1159 = vpop.f32.mrb[0].mxu0
        %v1160 = vpop.f32.mrb[0].mxu0
        %1161 = vdwg.mxu0
        %v1162 = vadd.f32 %v1052, %v1116
        %v1163 = vadd.f32 %v1053, %v1118
        %v1164 = vadd.f32 %v1054, %v1157
        %v1165 = vld [vmem:[%s2] sm:$0xff]
        %1167 = vset.pattern.permute.xlu0 0
        %1168 = vperm.xlu0 %1167, %v1165
        %v1169 = vpop.permute.xlu0 %1168
        %v1171 = vadd.f32 %v1162, %v1169
        %v1172 = vadd.f32 %v1163, %v1169
        %v1173 = vadd.f32 %v1164, %v1169
        %vm1174 = vcmp.ge.f32.partialorder %v1171, 0.0
        %vm1175 = vcmp.ge.f32.partialorder %v1172, 0.0
        %vm1176 = vcmp.ge.f32.partialorder %v1173, 0.0
        %v1177 = vmul.f32 %v1171, 0.2
        %v1178 = vmul.f32 %v1172, 0.2
        %v1179 = vmul.f32 %v1173, 0.2
        %v1180 = vsel %vm1174, %v1171, %v1177
        %v1181 = vsel %vm1175, %v1172, %v1178
        %v1182 = vsel %vm1176, %v1173, %v1179
        %1183 = vst [vmem:[%s163] sm:$0xff] %v1180
        %1184 = vst [vmem:[%s163 + $0x8] sm:$0xff] %v1181
        %1185 = vst [vmem:[%s163 + $0x10] sm:$0xff] %v1182
        %s1186 = sand.u32 %s93, 1
        %s1187 = scalar_lea.sflag [#allocation3], %s1186
        %s1188 = sand.u32 %s93, 1
        %s1189 = smul.addr %s1188, 24
        %s1190 = scalar_lea.vmem [#allocation2], %s1189
        // Predicated region
        $region33: #{tpu_custom_call.1} parent=31 // pred_check
          %p1191 = pneg %p103
        $region34: #{tpu_custom_call.1} parent=31 // pred_check_branch
          %1193 = sbr.rel (%p1191) target = $region36
        $region35: #{tpu_custom_call.1} parent=31 // pred_region
          %s1195 = ssub.s32 384, 384
          %1196 = vsyncadd %s1187, %s1195
          %s1197 = smul.addr %s17, 3
          %s1198 = smul.addr %s1197, 128
          %s1199 = scalar_lea.hbm %s3, %s1198
          %s1201 = sshll.u32 %s1190, 4
          %s1202 = int_to_ptr.vmem [resolvable:$true] %s1201
          %1204 = dma.vmem_to_hbm [thread:$0]  %s1202, 384, %s1199, %s1187
        $region36: #{tpu_custom_call.1} parent=31 // pred_fallthru
          _
      $region32: #{tpu_custom_call.1} parent=5 // pred_fallthru
        _
      %p1205 = scmp.le.s32.totalorder 2, %s12
      // Predicated region
      $region37: #{tpu_custom_call.1} parent=5 // pred_check
        %p1206 = pneg %p1205
      $region38: #{tpu_custom_call.1} parent=5 // pred_check_branch
        %1208 = sbr.rel (%p1206) target = $region40
      $region39: #{tpu_custom_call.1} parent=5 // pred_region
        %s1209 = ssub.s32 %s12, 2
        // Predicated region
        $region41: #{tpu_custom_call.1} parent=39 // pred_check
          %p1210 = pneg %p109
        $region42: #{tpu_custom_call.1} parent=39 // pred_check_branch
          %1212 = sbr.rel (%p1210) target = $region44
        $region43: #{tpu_custom_call.1} parent=39 // pred_region
          %s1213 = sand.u32 %s94, 1
          %s1214 = scalar_lea.sflag [#allocation3], %s1213
          %s1215 = sand.u32 %s94, 1
          %s1216 = smul.addr %s1215, 24
          %s1217 = scalar_lea.vmem [#allocation2], %s1216
          %1218 = dma.done %s1214, 384
        $region44: #{tpu_custom_call.1} parent=39 // pred_fallthru
          _
      $region40: #{tpu_custom_call.1} parent=5 // pred_fallthru
        _
    $region6: #{tpu_custom_call.1} parent=1 // loop_footer
      %s16 = sadd.s32 1, %s12
    $region7: #{tpu_custom_call.1} parent=1 // loop_footer_branch
      %11 = sbr.rel target = $region3
    $region8: #{tpu_custom_call.1} parent=1 // loop_exit
      _
    %1219 = vsyncpa [#allocation3], 1
    %s1220 = scalar_lea.sflag [#allocation3], 1
    %1221 = vsyncpa %s1220, 1

</llo_original>
